<compile_context>
chip_gen: v7x
topology: tpu7x:2x2x1
jax: 0.10.0
libtpu: 0.0.40
codegen_flags: <defaults>
</compile_context>

<pallas_src>
import jax
import jax.numpy as jnp
from jax.experimental import pallas as pl
from jax.experimental.pallas import tpu as pltpu


# ---------------------------------------------------------------------------
# Primary: zero-copy identity via input/output aliasing (no HBM traffic).
# ---------------------------------------------------------------------------
def _identity_alias_kernel(x_ref, o_ref):
    del x_ref                  # unused: the output buffer *is* the input buffer
    pltpu.touch(o_ref)         # dependency only; no data movement


def _identity_alias(x):
    return pl.pallas_call(
        _identity_alias_kernel,
        out_shape=jax.ShapeDtypeStruct(x.shape, x.dtype),
        in_specs=[pl.BlockSpec(memory_space=pl.ANY)],
        out_specs=pl.BlockSpec(memory_space=pl.ANY),
        input_output_aliases={0: 0},
    )(x)


# ---------------------------------------------------------------------------
# Fallback: lane-dense, large-block streaming copy (safety net only).
# ---------------------------------------------------------------------------
_TARGET_BLOCK_BYTES = 4 * 1024 * 1024   # ~4 MiB/block -> ~16 MiB double-buffered
_MAX_LANE_WIDTH = 16384                 # wide, 128-multiple last dim


def _copy_kernel(x_ref, o_ref):
    o_ref[...] = x_ref[...]


def _identity_copy(x):
    orig_shape = x.shape
    n = int(x.size)
    if n == 0:
        return x  # nothing to move

    # Lane-dense 2D slab: last dim a wide multiple of 128 whenever possible.
    if n % 128 == 0:
        c = 128
        while c * 2 <= _MAX_LANE_WIDTH and n % (c * 2) == 0:
            c *= 2
    else:
        # TODO(synk): element counts not divisible by 128 fall back to one
        # full-array block (legal for any shape, fine for small tensors).
        c = n
    r = n // c
    x2 = x.reshape(r, c)

    itemsize = x.dtype.itemsize
    sublane = max(8, 32 // itemsize)        # 8 f32 / 16 bf16 / 32 int8-fp8
    row_bytes = c * itemsize
    max_rows = max(1, _TARGET_BLOCK_BYTES // row_bytes)

    # Largest sublane-aligned divisor of r within the block budget.
    tr = 0
    d = sublane
    while d <= min(r, max_rows):
        if r % d == 0:
            tr = d
        d += sublane
    if tr == 0:
        if r * row_bytes <= 2 * _TARGET_BLOCK_BYTES:
            tr = r                          # one block == full array (always legal)
        else:
            tr = 1
            for d in range(min(r, max_rows), 0, -1):
                if r % d == 0:
                    tr = d
                    break

    out = pl.pallas_call(
        _copy_kernel,
        out_shape=jax.ShapeDtypeStruct((r, c), x.dtype),
        grid=(r // tr,),
        in_specs=[pl.BlockSpec((tr, c), lambda i: (i, 0))],
        out_specs=pl.BlockSpec((tr, c), lambda i: (i, 0)),
        compiler_params=pltpu.CompilerParams(
            dimension_semantics=("parallel",),   # shard row tiles across v7x's 2 TCs
            vmem_limit_bytes=32 << 20,           # safe scoped limit on v5e/v6e/v7x
        ),
    )(x2)
    return out.reshape(orig_shape)


# ---------------------------------------------------------------------------
# Public wrapper (matches PyTorch forward: returns x unchanged).
# ---------------------------------------------------------------------------
_use_alias_path = None  # decided once, on first call


def feed_forward_module_2_forward(x):
    """Identity forward pass of `feed_forward_module_2`."""
    global _use_alias_path
    x = jnp.asarray(x)
    if _use_alias_path is None:
        try:
            out = jax.block_until_ready(_identity_alias(x))
            _use_alias_path = True
            return out
        except Exception:   # safety net: fall back to the streaming copy kernel
            _use_alias_path = False
            return _identity_copy(x)
    return _identity_alias(x) if _use_alias_path else _identity_copy(x)


if __name__ == "__main__":
    key = jax.random.PRNGKey(0)

    # NCHW-style input consistent with the module: (B=2, C=4, H=16, W=16).
    x = jax.random.normal(key, (2, 4, 16, 16), dtype=jnp.float32)
    y = jax.block_until_ready(feed_forward_module_2_forward(x))
    assert y.shape == x.shape and y.dtype == x.dtype
    assert bool(jnp.all(y == x))

    # Awkward (non-128-aligned) shape / different dtype, exercised for robustness.
    x2 = jax.random.normal(jax.random.PRNGKey(0), (3, 5, 7), dtype=jnp.bfloat16)
    y2 = jax.block_until_ready(feed_forward_module_2_forward(x2))
    assert y2.shape == x2.shape and y2.dtype == x2.dtype
    assert bool(jnp.all(y2 == x2))

    print("KERNEL_OK")
</pallas_src>

<mosaic_0001>
module attributes {stable_mosaic.version = 11 : i64} {
  func.func @_identity_alias_kernel(%arg0: memref<2x4x16x16xf32, #tpu.memory_space<any>>, %arg1: memref<2x4x16x16xf32, #tpu.memory_space<any>>) attributes {dimension_semantics = [], scalar_prefetch = 0 : i64, scratch_operands = 0 : i64, tpu.core_type = #tpu.core_type<tc>} {
    return
  }
}

module attributes {stable_mosaic.version = 11 : i64} {
  func.func @_copy_kernel(%arg0: i32, %arg1: memref<1x2048xf32, #tpu.memory_space<vmem>>, %arg2: memref<1x2048xf32, #tpu.memory_space<vmem>>) attributes {dimension_semantics = [#tpu.dimension_semantics<parallel>], iteration_bounds = array<i64: 1>, scalar_prefetch = 0 : i64, scratch_operands = 0 : i64, tpu.core_type = #tpu.core_type<tc>, window_params = [{transform_indices = @transform_0, window_bounds = array<i64: 1, 2048>}, {transform_indices = @transform_1, window_bounds = array<i64: 1, 2048>}]} {
    %c0 = arith.constant 0 : index
    %c0_0 = arith.constant 0 : index
    %0 = vector.load %arg1[%c0, %c0_0] : memref<1x2048xf32, #tpu.memory_space<vmem>>, vector<1x2048xf32>
    %c0_1 = arith.constant 0 : index
    %c0_2 = arith.constant 0 : index
    %1 = vector.load %arg2[%c0_1, %c0_2] : memref<1x2048xf32, #tpu.memory_space<vmem>>, vector<1x2048xf32>
    tpu.vector_store %arg2[%c0_1, %c0_2], %0 {strides = array<i32>} : memref<1x2048xf32, #tpu.memory_space<vmem>>, vector<1x2048xf32>,
    return
  }
  func.func @transform_0(%arg0: i32) -> (i32, i32) {
    %c0_i32 = arith.constant 0 : i32
    %c0_i32_0 = arith.constant 0 : i32
    return %arg0, %c0_i32 : i32, i32
  }
  func.func @transform_1(%arg0: i32) -> (i32, i32) {
    %c0_i32 = arith.constant 0 : i32
    %c0_i32_0 = arith.constant 0 : i32
    return %arg0, %c0_i32 : i32, i32
  }
}

</mosaic_0001>

<llo_original>
// kernel: tpu_custom_call.1
$region0: #{tpu_custom_call.1}
  #allocation0 [shape = 'u32[]', space=smem, size = 0x4, offset = 0x4, fixed_abs, tag = 'smem constant byte address 0x4 - core index']
  #allocation1 [shape = 'u32[144,128]{1,0:T(1,128)}', space=vmem, size = 0x12000, scoped, tag = 'internal scratch']
  %s0 = inlined_call_operand.hbm [shape: f32[2,4,16,16], index: 0, kind: input, shape index: {}, may-alias: {0,1}]
  %s1 = inlined_call_operand.hbm [shape: f32[2,4,16,16], index: 1, kind: output, shape index: {}, may-alias: {0,1}]
  %s2 = sld [smem:[#allocation0]]
  $region2: #{tpu_custom_call.1} parent=0
    _
  %s4 = ssub.s32 1, %s2
  %s5 = scalar_select 0, %s4, %s2

// kernel: tpu_custom_call.1
$region0: #{tpu_custom_call.1}
  #allocation0 [shape = 'u32[]', space=smem, size = 0x4, offset = 0x4, fixed_abs, tag = 'smem constant byte address 0x4 - core index']
  #allocation1 [shape = 'u32[144,128]{1,0:T(1,128)}', space=vmem, size = 0x12000, scoped, tag = 'internal scratch']
  %s0 = inlined_call_operand.hbm [shape: f32[1,2048], index: 0, kind: input, shape index: {}]
  %s1 = inlined_call_operand.hbm [shape: f32[1,2048], index: 1, kind: output, shape index: {}]
  %s2 = sld [smem:[#allocation0]]
  $region18: #{tpu_custom_call.1} parent=0
    _
  %s4 = ssub.s32 1, %s2
  %s5 = scalar_select 0, %s4, %s2
  $region1: #{tpu_custom_call.1} parent=0
    #allocation2 [shape = 'u8[8192]{0}', space=vmem, size = 0x2000, scoped, tag = 'input window, operand 0, single buffered']
    #allocation3 [shape = 's32[1]{0}', space=sflag, size = 0x4, scoped, tag = 'scoped memory for tpu_custom_call.1']
    #allocation4 [shape = 's32[1]{0}', space=sflag, size = 0x4, scoped, tag = 'scoped memory for tpu_custom_call.1']
    #allocation5 [shape = 'u8[8192]{0}', space=vmem, size = 0x2000, scoped, tag = 'output window, operand 0, single buffered']
    %6 = vsyncpa [#allocation3], 0
    %7 = vsyncpa [#allocation4], 0
    // Predicated region
    $region2: #{tpu_custom_call.1} parent=1 // pred_check
      _
    $region3: #{tpu_custom_call.1} parent=1 // pred_check_branch
      %9 = sbr.rel (0) target = $region5
    $region4: #{tpu_custom_call.1} parent=1 // pred_region
      %s11 = ssub.s32 256, 256
      %12 = vsyncadd [#allocation3], %s11
      %s14 = sshll.u32 [#allocation2], 4
      %s15 = int_to_ptr.vmem [resolvable:$true] %s14
      %17 = dma.hbm_to_vmem [thread:$0]  %s0, 256, %s15, [#allocation3]
    $region5: #{tpu_custom_call.1} parent=1 // pred_fallthru
      _
    // Predicated region
    $region6: #{tpu_custom_call.1} parent=1 // pred_check
      _
    $region7: #{tpu_custom_call.1} parent=1 // pred_check_branch
      %19 = sbr.rel (0) target = $region9
    $region8: #{tpu_custom_call.1} parent=1 // pred_region
      %20 = dma.done [#allocation3], 256
    $region9: #{tpu_custom_call.1} parent=1 // pred_fallthru
      _
    %v21 = vld [vmem:[#allocation2] sm:$0xff]
    %v22 = vld [vmem:[#allocation2 + $0x8] sm:$0xff]
    %23 = vst [vmem:[#allocation5] sm:$0xff] %v21
    %24 = vst [vmem:[#allocation5 + $0x8] sm:$0xff] %v22
    // Predicated region
    $region10: #{tpu_custom_call.1} parent=1 // pred_check
      _
    $region11: #{tpu_custom_call.1} parent=1 // pred_check_branch
      %26 = sbr.rel (0) target = $region13
    $region12: #{tpu_custom_call.1} parent=1 // pred_region
      %s28 = ssub.s32 256, 256
      %29 = vsyncadd [#allocation4], %s28
      %s31 = sshll.u32 [#allocation5], 4
      %s32 = int_to_ptr.vmem [resolvable:$true] %s31
      %34 = dma.vmem_to_hbm [thread:$0]  %s32, 256, %s1, [#allocation4]
    $region13: #{tpu_custom_call.1} parent=1 // pred_fallthru
      _
    // Predicated region
    $region14: #{tpu_custom_call.1} parent=1 // pred_check
      _
    $region15: #{tpu_custom_call.1} parent=1 // pred_check_branch
      %36 = sbr.rel (0) target = $region17
    $region16: #{tpu_custom_call.1} parent=1 // pred_region
      %37 = dma.done [#allocation4], 256
    $region17: #{tpu_custom_call.1} parent=1 // pred_fallthru
      _
    %38 = vsyncpa [#allocation3], 1
    %39 = vsyncpa [#allocation4], 1

</llo_original>
